<compile_context>
chip_gen: v7x
topology: tpu7x:2x2x1
jax: 0.10.0
libtpu: 0.0.40
codegen_flags: <defaults>
</compile_context>

<pallas_src>
import functools
import math

import jax
import jax.numpy as jnp
from jax import lax
from jax.experimental import pallas as pl
from jax.experimental.pallas import tpu as pltpu


_VMEM_LIMIT_BYTES = 48 * 1024 * 1024    # < v7x 64 MiB physical, >> 16/32 MiB scoped defaults
_BLOCK_BUDGET_BYTES = 8 * 1024 * 1024   # target per-block working set (2x-buffered fits limit)


# ------------------------------ in-kernel helpers ------------------------------

def _tap(buf, off, W, P_out):
    """buf[:, W + q + off] for q in [0, P_out): XLU roll + aligned prefix slice.
    The only wrap-around lanes are the two corner taps the caller masks anyway."""
    Pb = buf.shape[-1]
    shift = (-(W + off)) % Pb
    t = buf if shift == 0 else pltpu.roll(buf, shift, 1)
    return t[:, :P_out]


def _conv3x3_taps(buf, w_flat_ref, border, lmask, rmask, *, W, P_out):
    """3x3 VALID conv over the haloed strip `buf` ((Cin, Pb_pad); the halo row above
    and below already holds the correct ring value).  Left/right ring is `border`
    ((Cin, P_out) array or scalar 0.0) selected via the hoisted column masks.
    Weights are pre-flattened host-side to (Cout, 9*Cin) tap-major; the nine taps
    are stacked on the channel axis and contracted in ONE K=9*Cin MXU matmul."""
    C = buf.shape[0]
    lm = jnp.broadcast_to(lmask, (C, P_out))
    rm = jnp.broadcast_to(rmask, (C, P_out))
    taps = []
    for dy in range(3):
        for dx in range(3):
            t = _tap(buf, (dy - 1) * W + (dx - 1), W, P_out)
            if dx == 0:
                t = jnp.where(lm, border, t)
            elif dx == 2:
                t = jnp.where(rm, border, t)
            taps.append(t)
    rhs = jnp.concatenate(taps, axis=0)                       # (9*Cin, P_out)
    return jnp.dot(w_flat_ref[...], rhs, preferred_element_type=jnp.float32)


def _laplacian(buf, border, lmask, rmask, *, W, P_out):
    """Depthwise up+down+left+right-4*center over the haloed strip."""
    C = buf.shape[0]
    lm = jnp.broadcast_to(lmask, (C, P_out))
    rm = jnp.broadcast_to(rmask, (C, P_out))
    up = _tap(buf, -W, W, P_out)
    dn = _tap(buf, W, W, P_out)
    lf = jnp.where(lm, border, _tap(buf, -1, W, P_out))
    rt = jnp.where(rm, border, _tap(buf, 1, W, P_out))
    ce = _tap(buf, 0, W, P_out)
    return up + dn + lf + rt - 4.0 * ce


def _mm(w_ref, x, b_ref):
    """1x1 conv in pixel-last layout: (Co, Ci) @ (Ci, P) + (Co, 1)."""
    return jnp.dot(w_ref[...], x, preferred_element_type=jnp.float32) + b_ref[...]


def _masks(m_ref):
    return m_ref[0:1, :] > 0.5, m_ref[1:2, :] > 0.5


# ------------------------------- fused kernels ---------------------------------

def _k_c13(x_ref, m_ref, k0_ref, b0_ref, k1_ref, b1_ref, o_ref, *, W, P_out):
    lmask, rmask = _masks(m_ref)
    y0 = _mm(k0_ref, x_ref[...], b0_ref)                      # (Cm, Pb_pad)
    border = jnp.broadcast_to(b0_ref[...], (y0.shape[0], P_out))
    y1 = _conv3x3_taps(y0, k1_ref, border, lmask, rmask, W=W, P_out=P_out) + b1_ref[...]
    o_ref[...] = y1.astype(o_ref.dtype)


def _k_c131(x_ref, m_ref, k0_ref, b0_ref, k1_ref, b1_ref, k2_ref, b2_ref, o_ref,
            *, W, P_out):
    lmask, rmask = _masks(m_ref)
    y0 = _mm(k0_ref, x_ref[...], b0_ref)
    border = jnp.broadcast_to(b0_ref[...], (y0.shape[0], P_out))
    y1 = _conv3x3_taps(y0, k1_ref, border, lmask, rmask, W=W, P_out=P_out) + b1_ref[...]
    y2 = _mm(k2_ref, y1, b2_ref)
    o_ref[...] = y2.astype(o_ref.dtype)


def _k_c31(x_ref, m_ref, k0_ref, b0_ref, k1_ref, b1_ref, o_ref, *, W, P_out):
    lmask, rmask = _masks(m_ref)
    y0 = _conv3x3_taps(x_ref[...], k0_ref, 0.0, lmask, rmask,
                       W=W, P_out=P_out) + b0_ref[...]        # zero ring around x
    y1 = _mm(k1_ref, y0, b1_ref)
    o_ref[...] = y1.astype(o_ref.dtype)


def _k_lap(x_ref, m_ref, k0_ref, b0_ref, scale_ref, bias_ref, o_ref, *, W, P_out):
    lmask, rmask = _masks(m_ref)
    y0 = _mm(k0_ref, x_ref[...], b0_ref)                      # (Co, Pb_pad)
    border = jnp.broadcast_to(b0_ref[...], (y0.shape[0], P_out))
    lap = _laplacian(y0, border, lmask, rmask, W=W, P_out=P_out)
    o_ref[...] = (lap * scale_ref[...] + bias_ref[...]).astype(o_ref.dtype)


_KERNELS = {
    'conv1x1-conv3x3': (_k_c13, ('k0', 'b0', 'k1', 'b1'), 'b1'),
    'conv1x1-conv3x3-conv1x1': (_k_c131, ('k0', 'b0', 'k1', 'b1', 'k2', 'b2'), 'b2'),
    'conv3x3-conv1x1': (_k_c31, ('k0', 'b0', 'k1', 'b1'), 'b1'),
    'conv1x1-laplacian': (_k_lap, ('k0', 'b0', 'scale', 'bias'), 'bias'),
}


# ----------------------------- pallas_call wrapper ------------------------------

def _per_pixel_bytes(seq_type, Ci, Co, params):
    """Rough f32 bytes of in-kernel working set per valid output pixel (conservative:
    counts taps and their stacked copy as simultaneously live)."""
    if seq_type == 'conv1x1-conv3x3':
        Cm = params['k0'].shape[0]
        chan = 2 * Ci + Cm + 18 * Cm + 3 * Co
    elif seq_type == 'conv1x1-conv3x3-conv1x1':
        Cm = params['k0'].shape[0]
        chan = 2 * Ci + Cm + 18 * Cm + 2 * Cm + 3 * Co
    elif seq_type == 'conv3x3-conv1x1':
        Cm = params['b0'].shape[0]
        chan = 2 * Ci + 18 * Ci + 2 * Cm + 3 * Co
    else:  # conv1x1-laplacian
        chan = 2 * Ci + Co + 8 * Co + 3 * Co
    return 4 * (chan + 8)


def _choose_strip_rows(H, W, target_px):
    """Rows per strip: multiple of 128/gcd(W,128) so each strip's pixel count is a
    multiple of 128 (lane-dense output stores)."""
    row_align = 128 // math.gcd(W, 128)
    h_ceil = -(-H // row_align) * row_align
    if h_ceil > 2 * H:
        # Awkward tiny shapes: single whole-image (possibly lane-masked) block.
        return H, 1
    th = max(row_align, (target_px // max(W, 1)) // row_align * row_align)
    th = min(th, h_ceil)
    return th, -(-H // th)


def seq_conv3x3_forward(x_nchw, params, seq_type, *, max_block_pixels=None):
    """Fused SeqConv3x3.forward: (N, C, H, W) f32 NCHW -> (N, Co, H, W) f32."""
    if seq_type not in _KERNELS:
        raise ValueError('the type of seqconv is not supported!')
    kern, names, out_bias = _KERNELS[seq_type]
    wts = [params[nm] for nm in names]
    Co = params[out_bias].shape[0]

    x = x_nchw.astype(jnp.float32)
    N, Ci, H, W = x.shape

    target_px = max(1, _BLOCK_BUDGET_BYTES // _per_pixel_bytes(seq_type, Ci, Co, params))
    if max_block_pixels is not None:
        target_px = max(W, min(target_px, max_block_pixels))
    th, S = _choose_strip_rows(H, W, target_px)
    H_pad = th * S
    P_out = th * W                       # valid pixels per strip (lane dim of out block)
    Pb = (th + 2) * W                    # + one halo row above and below
    Pb_pad = -(-Pb // 128) * 128         # lane-dense input block

    # Host-side restructuring: zero-pad rows (1 top, 1 + H_pad - H bottom) and cut
    # haloed row strips.  The zero halo rows give the 3x3's vertical ring value for
    # free in-kernel (conv1x1(0)+b0 == b0; 0 for the conv3x3-first type).
    xp = jnp.pad(x, ((0, 0), (0, 0), (1, 1 + H_pad - H), (0, 0)))
    xs = jnp.stack([lax.slice_in_dim(xp, s * th, s * th + th + 2, axis=2)
                    for s in range(S)], axis=1)               # (N, S, Ci, th+2, W)
    xs = xs.reshape(N, S, Ci, Pb)
    if Pb_pad > Pb:
        xs = jnp.pad(xs, ((0, 0), (0, 0), (0, 0), (0, Pb_pad - Pb)))

    # Left/right column masks, precomputed host-side (no in-kernel vector remainder).
    cols = jnp.arange(P_out, dtype=jnp.int32) % W
    colmask = jnp.stack([cols == 0, cols == W - 1]).astype(jnp.float32)   # (2, P_out)

    def bcast(arr):
        return pl.BlockSpec(arr.shape, lambda n, s, _z=(0,) * arr.ndim: _z)

    out = pl.pallas_call(
        functools.partial(kern, W=W, P_out=P_out),
        out_shape=jax.ShapeDtypeStruct((N, Co, H_pad * W), jnp.float32),
        grid=(N, S),
        in_specs=[pl.BlockSpec((pl.Squeezed(), pl.Squeezed(), Ci, Pb_pad),
                               lambda n, s: (n, s, 0, 0)),
                  pl.BlockSpec((2, P_out), lambda n, s: (0, 0))]
                 + [bcast(w) for w in wts],
        out_specs=pl.BlockSpec((pl.Squeezed(), Co, P_out), lambda n, s: (n, 0, s)),
        compiler_params=pltpu.CompilerParams(
            dimension_semantics=("parallel", "parallel"),
            vmem_limit_bytes=_VMEM_LIMIT_BYTES),
    )(xs, colmask, *wts)

    out = out.reshape(N, Co, H_pad, W)
    return out if H_pad == H else out[:, :, :H, :]


# --------------------- deterministic params + torch-layout ref --------------------

def _w1x1(wt):   # (O, I, 1, 1) -> (O, I)
    return wt[:, :, 0, 0]


def _w3x3_flat(wt):   # (O, I, 3, 3) -> (O, 9*I), tap-major (t = dy*3 + dx), channel-minor
    O, I = wt.shape[0], wt.shape[1]
    return jnp.transpose(wt, (0, 2, 3, 1)).reshape(O, 9 * I)


def _bcol(b):    # (C,) -> (C, 1): broadcasts along the pixel (lane) axis
    return b.reshape(-1, 1)


def init_torch_params(key, seq_type, inp, out, depth_multiplier):
    mid = int(out * depth_multiplier)
    ks = jax.random.split(key, 8)
    w = lambda k, s, scale=0.1: (jax.random.normal(k, s, jnp.float32) * scale)
    if seq_type == 'conv1x1-conv3x3':
        return dict(k0=w(ks[0], (mid, inp, 1, 1)), b0=w(ks[1], (mid,)),
                    k1=w(ks[2], (out, mid, 3, 3)), b1=w(ks[3], (out,)))
    if seq_type == 'conv1x1-conv3x3-conv1x1':
        return dict(k0=w(ks[0], (mid, inp, 1, 1)), b0=w(ks[1], (mid,)),
                    k1=w(ks[2], (mid, mid, 3, 3)), b1=w(ks[3], (mid,)),
                    k2=w(ks[4], (out, mid, 1, 1)), b2=w(ks[5], (out,)))
    if seq_type == 'conv3x3-conv1x1':
        return dict(k0=w(ks[0], (mid, inp, 3, 3)), b0=w(ks[1], (mid,)),
                    k1=w(ks[2], (out, mid, 1, 1)), b1=w(ks[3], (out,)))
    if seq_type == 'conv1x1-laplacian':
        return dict(k0=w(ks[0], (out, inp, 1, 1)), b0=w(ks[1], (out,)),
                    scale=w(ks[2], (out, 1, 1, 1), 0.001),
                    bias=w(ks[3], (out,), 0.001))
    raise ValueError(seq_type)


def convert_params(tp, seq_type):
    if seq_type == 'conv1x1-conv3x3':
        return dict(k0=_w1x1(tp['k0']), b0=_bcol(tp['b0']),
                    k1=_w3x3_flat(tp['k1']), b1=_bcol(tp['b1']))
    if seq_type == 'conv1x1-conv3x3-conv1x1':
        return dict(k0=_w1x1(tp['k0']), b0=_bcol(tp['b0']),
                    k1=_w3x3_flat(tp['k1']), b1=_bcol(tp['b1']),
                    k2=_w1x1(tp['k2']), b2=_bcol(tp['b2']))
    if seq_type == 'conv3x3-conv1x1':
        return dict(k0=_w3x3_flat(tp['k0']), b0=_bcol(tp['b0']),
                    k1=_w1x1(tp['k1']), b1=_bcol(tp['b1']))
    if seq_type == 'conv1x1-laplacian':
        return dict(k0=_w1x1(tp['k0']), b0=_bcol(tp['b0']),
                    scale=tp['scale'].reshape(-1, 1), bias=_bcol(tp['bias']))
    raise ValueError(seq_type)


def _conv2d_ref(x, w, b=None, groups=1):
    y = jax.lax.conv_general_dilated(
        x, w, (1, 1), 'VALID',
        dimension_numbers=('NCHW', 'OIHW', 'NCHW'),
        feature_group_count=groups)
    if b is not None:
        y = y + b.reshape(1, -1, 1, 1)
    return y


def ref_forward(x, tp, seq_type, out_planes):
    """Pure-JAX NCHW reference mirroring the PyTorch forward exactly."""
    if seq_type == 'conv1x1-conv3x3':
        y0 = _conv2d_ref(x, tp['k0'], tp['b0'])
        y0 = jnp.pad(y0, ((0, 0), (0, 0), (1, 1), (1, 1)))
        b0p = tp['b0'].reshape(1, -1, 1, 1)
        y0 = y0.at[:, :, 0:1, :].set(b0p).at[:, :, -1:, :].set(b0p)
        y0 = y0.at[:, :, :, 0:1].set(b0p).at[:, :, :, -1:].set(b0p)
        return _conv2d_ref(y0, tp['k1'], tp['b1'])
    if seq_type == 'conv1x1-conv3x3-conv1x1':
        xp = jnp.pad(x, ((0, 0), (0, 0), (1, 1), (1, 1)))
        y = _conv2d_ref(xp, tp['k0'], tp['b0'])
        y = _conv2d_ref(y, tp['k1'], tp['b1'])
        return _conv2d_ref(y, tp['k2'], tp['b2'])
    if seq_type == 'conv3x3-conv1x1':
        xp = jnp.pad(x, ((0, 0), (0, 0), (1, 1), (1, 1)))
        y = _conv2d_ref(xp, tp['k0'], tp['b0'])
        return _conv2d_ref(y, tp['k1'], tp['b1'])
    # conv1x1-laplacian
    y0 = _conv2d_ref(x, tp['k0'], tp['b0'])
    y0 = jnp.pad(y0, ((0, 0), (0, 0), (1, 1), (1, 1)))
    b0p = tp['b0'].reshape(1, -1, 1, 1)
    y0 = y0.at[:, :, 0:1, :].set(b0p).at[:, :, -1:, :].set(b0p)
    y0 = y0.at[:, :, :, 0:1].set(b0p).at[:, :, :, -1:].set(b0p)
    mask = jnp.zeros((out_planes, 1, 3, 3), jnp.float32)
    mask = mask.at[:, 0, 0, 1].set(1.0).at[:, 0, 1, 0].set(1.0)
    mask = mask.at[:, 0, 1, 2].set(1.0).at[:, 0, 2, 1].set(1.0)
    mask = mask.at[:, 0, 1, 1].set(-4.0)
    wdw = tp['scale'] * mask
    return _conv2d_ref(y0, wdw, tp['bias'], groups=out_planes)


# ----------------------------------- main ------------------------------------

if __name__ == "__main__":
    key = jax.random.PRNGKey(0)
    kx, kp, kx2, kp2 = jax.random.split(key, 4)

    # Config A: small image, single lane-dense block per batch element.
    N, C, H, W = 2, 4, 16, 16
    out_planes, dm = 4, 2.0
    xA = jax.random.normal(kx, (N, C, H, W), jnp.float32)

    # Config B: non-power-of-two W, H not a multiple of the strip height, and a small
    # max_block_pixels so the haloed row-strip grid axis is actually exercised (S=4).
    N2, C2, H2, W2 = 1, 3, 50, 48
    out2, dm2 = 6, 1.5
    xB = jax.random.normal(kx2, (N2, C2, H2, W2), jnp.float32)

    for seq_type in ('conv1x1-conv3x3', 'conv1x1-conv3x3-conv1x1',
                     'conv3x3-conv1x1', 'conv1x1-laplacian'):
        tpA = init_torch_params(kp, seq_type, C, out_planes, dm)
        y = seq_conv3x3_forward(xA, convert_params(tpA, seq_type), seq_type)
        y = jax.block_until_ready(y)
        y_ref = ref_forward(xA, tpA, seq_type, out_planes)
        assert y.shape == y_ref.shape, (seq_type, y.shape, y_ref.shape)
        err = float(jnp.max(jnp.abs(y - y_ref)))
        assert err < 3e-3, ('A', seq_type, err)

        tpB = init_torch_params(kp2, seq_type, C2, out2, dm2)
        y = seq_conv3x3_forward(xB, convert_params(tpB, seq_type), seq_type,
                                max_block_pixels=1024)
        y = jax.block_until_ready(y)
        y_ref = ref_forward(xB, tpB, seq_type, out2)
        assert y.shape == y_ref.shape, (seq_type, y.shape, y_ref.shape)
        err = float(jnp.max(jnp.abs(y - y_ref)))
        assert err < 3e-3, ('B', seq_type, err)

    print("KERNEL_OK")
</pallas_src>

<mosaic_0001>
module attributes {stable_mosaic.version = 11 : i64} {
  func.func @_k_c13(%arg0: i32, %arg1: i32, %arg2: memref<1x1x4x384xf32, #tpu.memory_space<vmem>>, %arg3: memref<2x256xf32, #tpu.memory_space<vmem>>, %arg4: memref<8x4xf32, #tpu.memory_space<vmem>>, %arg5: memref<8x1xf32, #tpu.memory_space<vmem>>, %arg6: memref<4x72xf32, #tpu.memory_space<vmem>>, %arg7: memref<4x1xf32, #tpu.memory_space<vmem>>, %arg8: memref<1x4x256xf32, #tpu.memory_space<vmem>>) attributes {dimension_semantics = [#tpu.dimension_semantics<parallel>, #tpu.dimension_semantics<parallel>], iteration_bounds = array<i64: 2, 1>, scalar_prefetch = 0 : i64, scratch_operands = 0 : i64, tpu.core_type = #tpu.core_type<tc>, window_params = [{transform_indices = @transform_0, window_bounds = array<i64: 1, 1, 4, 384>}, {pipeline_mode = #tpu.pipeline_mode<synchronous>, transform_indices = @transform_1, window_bounds = array<i64: 2, 256>}, {pipeline_mode = #tpu.pipeline_mode<synchronous>, transform_indices = @transform_2, window_bounds = array<i64: 8, 4>}, {pipeline_mode = #tpu.pipeline_mode<synchronous>, transform_indices = @transform_3, window_bounds = array<i64: 8, 1>}, {pipeline_mode = #tpu.pipeline_mode<synchronous>, transform_indices = @transform_4, window_bounds = array<i64: 4, 72>}, {pipeline_mode = #tpu.pipeline_mode<synchronous>, transform_indices = @transform_5, window_bounds = array<i64: 4, 1>}, {transform_indices = @transform_6, window_bounds = array<i64: 1, 4, 256>}]} {
    %c0 = arith.constant 0 : index
    %c0_0 = arith.constant 0 : index
    %0 = vector.load %arg3[%c0, %c0_0] : memref<2x256xf32, #tpu.memory_space<vmem>>, vector<1x256xf32>
    %cst = arith.constant 5.000000e-01 : f32
    %1 = vector.broadcast %cst : f32 to vector<1x256xf32>
    %2 = arith.cmpf ogt, %0, %1 : vector<1x256xf32>
    %c1 = arith.constant 1 : index
    %c0_1 = arith.constant 0 : index
    %3 = vector.load %arg3[%c1, %c0_1] : memref<2x256xf32, #tpu.memory_space<vmem>>, vector<1x256xf32>
    %cst_2 = arith.constant 5.000000e-01 : f32
    %4 = vector.broadcast %cst_2 : f32 to vector<1x256xf32>
    %5 = arith.cmpf ogt, %3, %4 : vector<1x256xf32>
    %c0_3 = arith.constant 0 : index
    %c0_4 = arith.constant 0 : index
    %c0_5 = arith.constant 0 : index
    %c0_6 = arith.constant 0 : index
    %6 = vector.load %arg2[%c0_3, %c0_4, %c0_5, %c0_6] : memref<1x1x4x384xf32, #tpu.memory_space<vmem>>, vector<1x1x4x384xf32>
    %7 = vector.shape_cast %6 : vector<1x1x4x384xf32> to vector<4x384xf32>
    %c0_7 = arith.constant 0 : index
    %c0_8 = arith.constant 0 : index
    %8 = vector.load %arg4[%c0_7, %c0_8] : memref<8x4xf32, #tpu.memory_space<vmem>>, vector<8x4xf32>
    %cst_9 = arith.constant dense<0.000000e+00> : vector<8x384xf32>
    %9 = tpu.matmul %8, %7, %cst_9 {dimension_numbers = #tpu.dot_dimension_numbers<[1], [0], [0], [1], [0, 0, 1, 1], [], []>} : vector<8x4xf32>, vector<4x384xf32>, vector<8x384xf32> -> vector<8x384xf32>
    %c0_10 = arith.constant 0 : index
    %c0_11 = arith.constant 0 : index
    %10 = vector.load %arg5[%c0_10, %c0_11] : memref<8x1xf32, #tpu.memory_space<vmem>>, vector<8x1xf32>
    %11 = vector.broadcast %10 : vector<8x1xf32> to vector<8x384xf32>
    %12 = arith.addf %9, %11 : vector<8x384xf32>
    %c0_12 = arith.constant 0 : index
    %c0_13 = arith.constant 0 : index
    %13 = vector.load %arg5[%c0_12, %c0_13] : memref<8x1xf32, #tpu.memory_space<vmem>>, vector<8x1xf32>
    %14 = vector.shape_cast %13 : vector<8x1xf32> to vector<8x1xf32>
    %15 = vector.broadcast %14 : vector<8x1xf32> to vector<8x256xf32>
    %16 = vector.shape_cast %2 : vector<1x256xi1> to vector<1x256xi1>
    %17 = vector.broadcast %16 : vector<1x256xi1> to vector<8x256xi1>
    %18 = vector.shape_cast %5 : vector<1x256xi1> to vector<1x256xi1>
    %19 = vector.broadcast %18 : vector<1x256xi1> to vector<8x256xi1>
    %c1_i32 = arith.constant 1 : i32
    %20 = tpu.dynamic_rotate %12 by %c1_i32 dim 1 : vector<8x384xf32>, i32 -> vector<8x384xf32>
    %21 = vector.extract_strided_slice %20 {offsets = [0, 0], sizes = [8, 256], strides = [1, 1]} : vector<8x384xf32> to vector<8x256xf32>
    %22 = arith.select %17, %15, %21 : vector<8x256xi1>, vector<8x256xf32>
    %23 = vector.extract_strided_slice %12 {offsets = [0, 0], sizes = [8, 256], strides = [1, 1]} : vector<8x384xf32> to vector<8x256xf32>
    %c383_i32 = arith.constant 383 : i32
    %24 = tpu.dynamic_rotate %12 by %c383_i32 dim 1 : vector<8x384xf32>, i32 -> vector<8x384xf32>
    %25 = vector.extract_strided_slice %24 {offsets = [0, 0], sizes = [8, 256], strides = [1, 1]} : vector<8x384xf32> to vector<8x256xf32>
    %26 = arith.select %19, %15, %25 : vector<8x256xi1>, vector<8x256xf32>
    %c369_i32 = arith.constant 369 : i32
    %27 = tpu.dynamic_rotate %12 by %c369_i32 dim 1 : vector<8x384xf32>, i32 -> vector<8x384xf32>
    %28 = vector.extract_strided_slice %27 {offsets = [0, 0], sizes = [8, 256], strides = [1, 1]} : vector<8x384xf32> to vector<8x256xf32>
    %29 = arith.select %17, %15, %28 : vector<8x256xi1>, vector<8x256xf32>
    %c368_i32 = arith.constant 368 : i32
    %30 = tpu.dynamic_rotate %12 by %c368_i32 dim 1 : vector<8x384xf32>, i32 -> vector<8x384xf32>
    %31 = vector.extract_strided_slice %30 {offsets = [0, 0], sizes = [8, 256], strides = [1, 1]} : vector<8x384xf32> to vector<8x256xf32>
    %c367_i32 = arith.constant 367 : i32
    %32 = tpu.dynamic_rotate %12 by %c367_i32 dim 1 : vector<8x384xf32>, i32 -> vector<8x384xf32>
    %33 = vector.extract_strided_slice %32 {offsets = [0, 0], sizes = [8, 256], strides = [1, 1]} : vector<8x384xf32> to vector<8x256xf32>
    %34 = arith.select %19, %15, %33 : vector<8x256xi1>, vector<8x256xf32>
    %c353_i32 = arith.constant 353 : i32
    %35 = tpu.dynamic_rotate %12 by %c353_i32 dim 1 : vector<8x384xf32>, i32 -> vector<8x384xf32>
    %36 = vector.extract_strided_slice %35 {offsets = [0, 0], sizes = [8, 256], strides = [1, 1]} : vector<8x384xf32> to vector<8x256xf32>
    %37 = arith.select %17, %15, %36 : vector<8x256xi1>, vector<8x256xf32>
    %c352_i32 = arith.constant 352 : i32
    %38 = tpu.dynamic_rotate %12 by %c352_i32 dim 1 : vector<8x384xf32>, i32 -> vector<8x384xf32>
    %39 = vector.extract_strided_slice %38 {offsets = [0, 0], sizes = [8, 256], strides = [1, 1]} : vector<8x384xf32> to vector<8x256xf32>
    %c351_i32 = arith.constant 351 : i32
    %40 = tpu.dynamic_rotate %12 by %c351_i32 dim 1 : vector<8x384xf32>, i32 -> vector<8x384xf32>
    %41 = vector.extract_strided_slice %40 {offsets = [0, 0], sizes = [8, 256], strides = [1, 1]} : vector<8x384xf32> to vector<8x256xf32>
    %42 = arith.select %19, %15, %41 : vector<8x256xi1>, vector<8x256xf32>
    %43 = tpu.concatenate %22, %23, %26, %29, %31, %34, %37, %39, %42 in 0 : vector<8x256xf32>, vector<8x256xf32>, vector<8x256xf32>, vector<8x256xf32>, vector<8x256xf32>, vector<8x256xf32>, vector<8x256xf32>, vector<8x256xf32>, vector<8x256xf32> -> vector<72x256xf32>
    %c0_14 = arith.constant 0 : index
    %c0_15 = arith.constant 0 : index
    %44 = vector.load %arg6[%c0_14, %c0_15] : memref<4x72xf32, #tpu.memory_space<vmem>>, vector<4x72xf32>
    %cst_16 = arith.constant dense<0.000000e+00> : vector<4x256xf32>
    %45 = tpu.matmul %44, %43, %cst_16 {dimension_numbers = #tpu.dot_dimension_numbers<[1], [0], [0], [1], [0, 0, 1, 1], [], []>} : vector<4x72xf32>, vector<72x256xf32>, vector<4x256xf32> -> vector<4x256xf32>
    %c0_17 = arith.constant 0 : index
    %c0_18 = arith.constant 0 : index
    %46 = vector.load %arg7[%c0_17, %c0_18] : memref<4x1xf32, #tpu.memory_space<vmem>>, vector<4x1xf32>
    %47 = vector.broadcast %46 : vector<4x1xf32> to vector<4x256xf32>
    %48 = arith.addf %45, %47 : vector<4x256xf32>
    %c0_19 = arith.constant 0 : index
    %c0_20 = arith.constant 0 : index
    %c0_21 = arith.constant 0 : index
    %49 = vector.load %arg8[%c0_19, %c0_20, %c0_21] : memref<1x4x256xf32, #tpu.memory_space<vmem>>, vector<1x4x256xf32>
    %50 = vector.shape_cast %49 : vector<1x4x256xf32> to vector<4x256xf32>
    %51 = vector.shape_cast %48 : vector<4x256xf32> to vector<1x4x256xf32>
    tpu.vector_store %arg8[%c0_19, %c0_20, %c0_21], %51 {strides = array<i32>} : memref<1x4x256xf32, #tpu.memory_space<vmem>>, vector<1x4x256xf32>,
    return
  }
  func.func @transform_0(%arg0: i32, %arg1: i32) -> (i32, i32, i32, i32) {
    %c0_i32 = arith.constant 0 : i32
    %c0_i32_0 = arith.constant 0 : i32
    %c0_i32_1 = arith.constant 0 : i32
    return %arg0, %arg1, %c0_i32, %c0_i32_0 : i32, i32, i32, i32
  }
  func.func @transform_1(%arg0: i32, %arg1: i32) -> (i32, i32) {
    %c0_i32 = arith.constant 0 : i32
    %c0_i32_0 = arith.constant 0 : i32
    %c0_i32_1 = arith.constant 0 : i32
    return %c0_i32, %c0_i32_0 : i32, i32
  }
  func.func @transform_2(%arg0: i32, %arg1: i32) -> (i32, i32) {
    %c0_i32 = arith.constant 0 : i32
    %c0_i32_0 = arith.constant 0 : i32
    %c0_i32_1 = arith.constant 0 : i32
    return %c0_i32, %c0_i32_0 : i32, i32
  }
  func.func @transform_3(%arg0: i32, %arg1: i32) -> (i32, i32) {
    %c0_i32 = arith.constant 0 : i32
    %c0_i32_0 = arith.constant 0 : i32
    %c0_i32_1 = arith.constant 0 : i32
    return %c0_i32, %c0_i32_0 : i32, i32
  }
  func.func @transform_4(%arg0: i32, %arg1: i32) -> (i32, i32) {
    %c0_i32 = arith.constant 0 : i32
    %c0_i32_0 = arith.constant 0 : i32
    %c0_i32_1 = arith.constant 0 : i32
    return %c0_i32, %c0_i32_0 : i32, i32
  }
  func.func @transform_5(%arg0: i32, %arg1: i32) -> (i32, i32) {
    %c0_i32 = arith.constant 0 : i32
    %c0_i32_0 = arith.constant 0 : i32
    %c0_i32_1 = arith.constant 0 : i32
    return %c0_i32, %c0_i32_0 : i32, i32
  }
  func.func @transform_6(%arg0: i32, %arg1: i32) -> (i32, i32, i32) {
    %c0_i32 = arith.constant 0 : i32
    %c0_i32_0 = arith.constant 0 : i32
    return %arg0, %c0_i32, %arg1 : i32, i32, i32
  }
}

</mosaic_0001>

<llo_original>
// kernel: tpu_custom_call.1
$region0: #{tpu_custom_call.1}
  #allocation0 [shape = 'u32[]', space=smem, size = 0x4, offset = 0x4, fixed_abs, tag = 'smem constant byte address 0x4 - core index']
  #allocation1 [shape = 'u32[144,128]{1,0:T(1,128)}', space=vmem, size = 0x12000, scoped, tag = 'internal scratch']
  %s0 = inlined_call_operand.vmem [shape: f32[2,1,4,384], index: 0, kind: input, shape index: {}]
  %s1 = inlined_call_operand.hbm [shape: f32[2,256], index: 1, kind: input, shape index: {}]
  %s2 = inlined_call_operand.vmem [shape: f32[8,4], index: 2, kind: input, shape index: {}]
  %s3 = inlined_call_operand.vmem [shape: f32[8,1], index: 3, kind: input, shape index: {}]
  %s4 = inlined_call_operand.vmem [shape: f32[4,72], index: 4, kind: input, shape index: {}]
  %s5 = inlined_call_operand.vmem [shape: f32[4,1], index: 5, kind: input, shape index: {}]
  %s6 = inlined_call_operand.hbm [shape: f32[2,4,256], index: 6, kind: output, shape index: {}]
  %s7 = sld [smem:[#allocation0]]
  $region61: #{tpu_custom_call.1} parent=0
    _
  %s9 = ssub.s32 1, %s7
  %s10 = scalar_select 0, %s9, %s7
  $region1: #{tpu_custom_call.1} parent=0
    #allocation2 [shape = 'u8[2048]{0}', space=vmem, size = 0x800, scoped, tag = 'input window, operand 1, single buffered']
    #allocation3 [shape = 's32[2]{0}', space=sflag, size = 0x8, scoped, tag = 'scoped memory for tpu_custom_call.1']
    #allocation4 [shape = 's32[2]{0}', space=sflag, size = 0x8, scoped, tag = 'scoped memory for tpu_custom_call.1']
    #allocation5 [shape = 'u8[8192]{0}', space=vmem, size = 0x2000, scoped, tag = 'output window, operand 0']
    %11 = vsyncpa [#allocation3], 0
    %12 = vsyncpa [#allocation4], 0
    %s13 = scalar_lea.sflag [#allocation4], 1
    %14 = vsyncpa %s13, 0
    loop: start=0, step=1, limit=4
    $region2: #{tpu_custom_call.1} parent=1 // loop_pre_header
      _
    $region3: #{tpu_custom_call.1} parent=1 // loop_header
      %s16 = sphi 0, %s20
      %p17 = scmp.ge.s32.totalorder %s16, 4
      %s23 = sphi 0, %s35
      %s24 = sphi 0, %s31
      %s25 = sphi 0, %s23
      %s26 = sphi 0, %s24
      %s27 = sphi 0, %s25
      %s28 = sphi 0, %s26
      %s40 = sphi 0, %s42
      %s43 = sphi 0, %s40
      %s44 = sphi 0, %s43
      %s60 = sphi 0, %s44
      %s64 = sphi 0, %s64
      %s66 = sphi 0, %s64
      %s67 = sphi 0, %s66
      %s81 = sphi 0, %s67
      %s85 = sphi 0, %s85
      %s87 = sphi 0, %s85
      %s88 = sphi 0, %s87
      %s102 = sphi 0, %s88
      %s106 = sphi 0, %s106
      %s108 = sphi 0, %s106
      %s109 = sphi 0, %s108
      %s123 = sphi 0, %s109
      %s127 = sphi 0, %s127
      %s129 = sphi 0, %s127
      %s130 = sphi 0, %s129
      %s144 = sphi 0, %s130
      %s148 = sphi 0, %s148
      %s150 = sphi 0, %s148
      %s151 = sphi 0, %s150
      %s165 = sphi 0, %s151
      %s173 = sphi 0, %s175
      %s176 = sphi 0, %s173
      %s177 = sphi 0, %s176
      %s193 = sphi 0, %s177
    $region4: #{tpu_custom_call.1} parent=1 // loop_header_branch
      %19 = sbr.rel (%p17) target = $region8
    $region5: #{tpu_custom_call.1} parent=1 // loop_body
      %s21 = ssub.s32 %s16, 1
      %s22 = ssub.s32 %s16, 2
      %s29 = sadd.s32 1, %s24
      %p30 = scmp.ge.s32.totalorder %s29, 1
      %s31 = scalar_select %p30, 0, %s29
      %s32 = sadd.s32 1, %s23
      %s33 = scalar_select %p30, %s32, %s23
      %p34 = scmp.ge.s32.totalorder %s33, 2
      %s35 = scalar_select %p34, 0, %s33
      %s36 = ssub.s32 %s23, %s35
      %s37 = ssub.s32 %s24, %s31
      %s38 = sor.u32 %s36, %s37
      %p39 = scmp.eq.s32.totalorder %s38, 0
      %s41 = sadd.s32 %s40, 1
      %s42 = scalar_select %p39, %s40, %s41
      %p45 = pneg %p39
      %p46 = scmp.eq.s32.totalorder %s16, 1
      %p47 = por %p45, %p46
      %p48 = scmp.ne.s32.totalorder %s40, %s43
      %p49 = scmp.eq.s32.totalorder %s16, 0
      %p50 = por %p48, %p49
      %p51 = scmp.ne.s32.totalorder %s40, %s43
      %p52 = scmp.eq.s32.totalorder %s21, 1
      %p53 = por %p51, %p52
      %p54 = scmp.ne.s32.totalorder %s43, %s44
      %p55 = scmp.eq.s32.totalorder %s21, 0
      %p56 = por %p54, %p55
      %p57 = scmp.ne.s32.totalorder %s43, %s44
      %p58 = scmp.eq.s32.totalorder %s22, 1
      %p59 = por %p57, %p58
      %p61 = scmp.ne.s32.totalorder %s44, %s60
      %p62 = scmp.eq.s32.totalorder %s22, 0
      %p63 = por %p61, %p62
      %s65 = sadd.s32 %s64, 1
      %p68 = scmp.eq.s32.totalorder %s16, 1
      %p69 = scmp.ne.s32.totalorder %s64, %s66
      %p70 = scmp.eq.s32.totalorder %s16, 0
      %p71 = por %p69, %p70
      %p72 = scmp.ne.s32.totalorder %s64, %s66
      %p73 = scmp.eq.s32.totalorder %s21, 1
      %p74 = por %p72, %p73
      %p75 = scmp.ne.s32.totalorder %s66, %s67
      %p76 = scmp.eq.s32.totalorder %s21, 0
      %p77 = por %p75, %p76
      %p78 = scmp.ne.s32.totalorder %s66, %s67
      %p79 = scmp.eq.s32.totalorder %s22, 1
      %p80 = por %p78, %p79
      %p82 = scmp.ne.s32.totalorder %s67, %s81
      %p83 = scmp.eq.s32.totalorder %s22, 0
      %p84 = por %p82, %p83
      %s86 = sadd.s32 %s85, 1
      %p89 = scmp.eq.s32.totalorder %s16, 1
      %p90 = scmp.ne.s32.totalorder %s85, %s87
      %p91 = scmp.eq.s32.totalorder %s16, 0
      %p92 = por %p90, %p91
      %p93 = scmp.ne.s32.totalorder %s85, %s87
      %p94 = scmp.eq.s32.totalorder %s21, 1
      %p95 = por %p93, %p94
      %p96 = scmp.ne.s32.totalorder %s87, %s88
      %p97 = scmp.eq.s32.totalorder %s21, 0
      %p98 = por %p96, %p97
      %p99 = scmp.ne.s32.totalorder %s87, %s88
      %p100 = scmp.eq.s32.totalorder %s22, 1
      %p101 = por %p99, %p100
      %p103 = scmp.ne.s32.totalorder %s88, %s102
      %p104 = scmp.eq.s32.totalorder %s22, 0
      %p105 = por %p103, %p104
      %s107 = sadd.s32 %s106, 1
      %p110 = scmp.eq.s32.totalorder %s16, 1
      %p111 = scmp.ne.s32.totalorder %s106, %s108
      %p112 = scmp.eq.s32.totalorder %s16, 0
      %p113 = por %p111, %p112
      %p114 = scmp.ne.s32.totalorder %s106, %s108
      %p115 = scmp.eq.s32.totalorder %s21, 1
      %p116 = por %p114, %p115
      %p117 = scmp.ne.s32.totalorder %s108, %s109
      %p118 = scmp.eq.s32.totalorder %s21, 0
      %p119 = por %p117, %p118
      %p120 = scmp.ne.s32.totalorder %s108, %s109
      %p121 = scmp.eq.s32.totalorder %s22, 1
      %p122 = por %p120, %p121
      %p124 = scmp.ne.s32.totalorder %s109, %s123
      %p125 = scmp.eq.s32.totalorder %s22, 0
      %p126 = por %p124, %p125
      %s128 = sadd.s32 %s127, 1
      %p131 = scmp.eq.s32.totalorder %s16, 1
      %p132 = scmp.ne.s32.totalorder %s127, %s129
      %p133 = scmp.eq.s32.totalorder %s16, 0
      %p134 = por %p132, %p133
      %p135 = scmp.ne.s32.totalorder %s127, %s129
      %p136 = scmp.eq.s32.totalorder %s21, 1
      %p137 = por %p135, %p136
      %p138 = scmp.ne.s32.totalorder %s129, %s130
      %p139 = scmp.eq.s32.totalorder %s21, 0
      %p140 = por %p138, %p139
      %p141 = scmp.ne.s32.totalorder %s129, %s130
      %p142 = scmp.eq.s32.totalorder %s22, 1
      %p143 = por %p141, %p142
      %p145 = scmp.ne.s32.totalorder %s130, %s144
      %p146 = scmp.eq.s32.totalorder %s22, 0
      %p147 = por %p145, %p146
      %s149 = sadd.s32 %s148, 1
      %p152 = scmp.eq.s32.totalorder %s16, 1
      %p153 = scmp.ne.s32.totalorder %s148, %s150
      %p154 = scmp.eq.s32.totalorder %s16, 0
      %p155 = por %p153, %p154
      %p156 = scmp.ne.s32.totalorder %s148, %s150
      %p157 = scmp.eq.s32.totalorder %s21, 1
      %p158 = por %p156, %p157
      %p159 = scmp.ne.s32.totalorder %s150, %s151
      %p160 = scmp.eq.s32.totalorder %s21, 0
      %p161 = por %p159, %p160
      %p162 = scmp.ne.s32.totalorder %s150, %s151
      %p163 = scmp.eq.s32.totalorder %s22, 1
      %p164 = por %p162, %p163
      %p166 = scmp.ne.s32.totalorder %s151, %s165
      %p167 = scmp.eq.s32.totalorder %s22, 0
      %p168 = por %p166, %p167
      %s169 = ssub.s32 %s23, %s35
      %s170 = ssub.s32 %s24, %s31
      %s171 = sor.u32 %s169, %s170
      %p172 = scmp.eq.s32.totalorder %s171, 0
      %s174 = sadd.s32 %s173, 1
      %s175 = scalar_select %p172, %s173, %s174
      %p178 = pneg %p172
      %p179 = scmp.eq.s32.totalorder %s16, 1
      %p180 = por %p178, %p179
      %p181 = scmp.ne.s32.totalorder %s173, %s176
      %p182 = scmp.eq.s32.totalorder %s16, 0
      %p183 = por %p181, %p182
      %p184 = scmp.ne.s32.totalorder %s173, %s176
      %p185 = scmp.eq.s32.totalorder %s21, 1
      %p186 = por %p184, %p185
      %p187 = scmp.ne.s32.totalorder %s176, %s177
      %p188 = scmp.eq.s32.totalorder %s21, 0
      %p189 = por %p187, %p188
      %p190 = scmp.ne.s32.totalorder %s176, %s177
      %p191 = scmp.eq.s32.totalorder %s22, 1
      %p192 = por %p190, %p191
      %p194 = scmp.ne.s32.totalorder %s177, %s193
      %p195 = scmp.eq.s32.totalorder %s22, 0
      %p196 = por %p194, %p195
      %p197 = scmp.le.s32.totalorder 1, %s16
      %p198 = scmp.lt.s32.totalorder %s16, 3
      %p199 = pnand %p197, %p198
      %p200 = pneg %p199
      // Predicated region
      $region9: #{tpu_custom_call.1} parent=5 // pred_check
        _
      $region10: #{tpu_custom_call.1} parent=5 // pred_check_branch
        %202 = sbr.rel (%p199) target = $region12
      $region11: #{tpu_custom_call.1} parent=5 // pred_region
        %s203 = ssub.s32 %s16, 1
        // Predicated region
        $region13: #{tpu_custom_call.1} parent=11 // pred_check
          %p204 = pneg %p77
        $region14: #{tpu_custom_call.1} parent=11 // pred_check_branch
          %206 = sbr.rel (%p204) target = $region16
        $region15: #{tpu_custom_call.1} parent=11 // pred_region
          %s208 = ssub.s32 64, 64
          %209 = vsyncadd [#allocation3], %s208
          %s211 = sshll.u32 [#allocation2], 4
          %s212 = int_to_ptr.vmem [resolvable:$true] %s211
          %214 = dma.hbm_to_vmem [thread:$0]  %s1, 64, %s212, [#allocation3]
        $region16: #{tpu_custom_call.1} parent=11 // pred_fallthru
          _
        // Predicated region
        $region17: #{tpu_custom_call.1} parent=11 // pred_check
          %p215 = pneg %p98
        $region18: #{tpu_custom_call.1} parent=11 // pred_check_branch
          %217 = sbr.rel (%p215) target = $region20
        $region19: #{tpu_custom_call.1} parent=11 // pred_region
          _
        $region20: #{tpu_custom_call.1} parent=11 // pred_fallthru
          _
        // Predicated region
        $region21: #{tpu_custom_call.1} parent=11 // pred_check
          %p218 = pneg %p119
        $region22: #{tpu_custom_call.1} parent=11 // pred_check_branch
          %220 = sbr.rel (%p218) target = $region24
        $region23: #{tpu_custom_call.1} parent=11 // pred_region
          _
        $region24: #{tpu_custom_call.1} parent=11 // pred_fallthru
          _
        // Predicated region
        $region25: #{tpu_custom_call.1} parent=11 // pred_check
          %p221 = pneg %p140
        $region26: #{tpu_custom_call.1} parent=11 // pred_check_branch
          %223 = sbr.rel (%p221) target = $region28
        $region27: #{tpu_custom_call.1} parent=11 // pred_region
          _
        $region28: #{tpu_custom_call.1} parent=11 // pred_fallthru
          _
        // Predicated region
        $region29: #{tpu_custom_call.1} parent=11 // pred_check
          %p224 = pneg %p161
        $region30: #{tpu_custom_call.1} parent=11 // pred_check_branch
          %226 = sbr.rel (%p224) target = $region32
        $region31: #{tpu_custom_call.1} parent=11 // pred_region
          _
        $region32: #{tpu_custom_call.1} parent=11 // pred_fallthru
          _
      $region12: #{tpu_custom_call.1} parent=5 // pred_fallthru
        _
      %p227 = scmp.lt.s32.totalorder %s16, 2
      // Predicated region
      $region33: #{tpu_custom_call.1} parent=5 // pred_check
        %p228 = pneg %p227
      $region34: #{tpu_custom_call.1} parent=5 // pred_check_branch
        %230 = sbr.rel (%p228) target = $region36
      $region35: #{tpu_custom_call.1} parent=5 // pred_region
        // Predicated region
        $region37: #{tpu_custom_call.1} parent=35 // pred_check
          %p231 = pneg %p50
        $region38: #{tpu_custom_call.1} parent=35 // pred_check_branch
          %233 = sbr.rel (%p231) target = $region40
        $region39: #{tpu_custom_call.1} parent=35 // pred_region
          %p234 = scmp.lt.s32.totalorder %s23, 1
          %s235 = scalar_select %p234, %s23, 1
          %p236 = scmp.lt.s32.totalorder %s24, 0
          %s237 = scalar_select %p236, %s24, 0
          %s238 = smul.addr %s237, 3
          %s239 = smul.addr %s235, 3
          %s240 = sadd.s32 %s238, %s239
          %s241 = smul.addr %s240, 4
          %s242 = scalar_lea.vmem %s0, %s241
        $region40: #{tpu_custom_call.1} parent=35 // pred_fallthru
          _
      $region36: #{tpu_custom_call.1} parent=5 // pred_fallthru
        _
      %p243 = scmp.le.s32.totalorder 1, %s16
      %p244 = scmp.lt.s32.totalorder %s16, 3
      %p245 = pnand %p243, %p244
      %p246 = pneg %p245
      // Predicated region
      $region41: #{tpu_custom_call.1} parent=5 // pred_check
        _
      $region42: #{tpu_custom_call.1} parent=5 // pred_check_branch
        %248 = sbr.rel (%p245) target = $region44
      $region43: #{tpu_custom_call.1} parent=5 // pred_region
        %s249 = ssub.s32 %s16, 1
        // Predicated region
        $region45: #{tpu_custom_call.1} parent=43 // pred_check
          %p250 = pneg %p77
        $region46: #{tpu_custom_call.1} parent=43 // pred_check_branch
          %252 = sbr.rel (%p250) target = $region48
        $region47: #{tpu_custom_call.1} parent=43 // pred_region
          %253 = dma.done [#allocation3], 64
        $region48: #{tpu_custom_call.1} parent=43 // pred_fallthru
          _
        %p254 = scmp.lt.s32.totalorder %s25, 1
        %s255 = scalar_select %p254, %s25, 1
        %p256 = scmp.lt.s32.totalorder %s26, 0
        %s257 = scalar_select %p256, %s26, 0
        %s258 = smul.addr %s257, 3
        %s259 = smul.addr %s255, 3
        %s260 = sadd.s32 %s258, %s259
        %s261 = smul.addr %s260, 4
        %s262 = scalar_lea.vmem %s0, %s261
        %p263 = pneg %p56
        %p264 = pneg %p53
        %p265 = pneg %p77
        %p266 = pneg %p74
        %p267 = pneg %p98
        %p268 = pneg %p95
        %p269 = pneg %p119
        %p270 = pneg %p116
        %p271 = pneg %p140
        %p272 = pneg %p137
        %p273 = pneg %p161
        %p274 = pneg %p158
        %p275 = pneg %p189
        %p276 = pneg %p186
        %s277 = sand.u32 %s176, 1
        %s278 = scalar_lea.sflag [#allocation4], %s277
        %s279 = sand.u32 %s176, 1
        %s280 = smul.addr %s279, 8
        %s281 = scalar_lea.vmem [#allocation5], %s280
        %p282 = scmp.lt.s32.totalorder %s25, 1
        %s283 = scalar_select %p282, %s25, 1
        %p284 = scmp.lt.s32.totalorder %s26, 0
        %s285 = scalar_select %p284, %s26, 0
        %s286 = smul.addr %s285, 3
        %s287 = smul.addr %s283, 3
        %s288 = sadd.s32 %s286, %s287
        %s289 = smul.addr %s288, 4
        %s290 = scalar_lea.vmem %s0, %s289
        %s291 = smul.u32 2, %s26
        %v292 = vld [vmem:[#allocation2] ss:$2 sm:$0x3]
        %vm293 = vcmp.gt.f32.partialorder %v292, 0.5
        %s294 = scalar_lea.vmem [#allocation2], 1
        %v295 = vld [vmem:[%s294] ss:$2 sm:$0x3]
        %vm296 = vcmp.gt.f32.partialorder %v295, 0.5
        %v297 = vld [vmem:[%s290] sm:$0xff]
        %v298 = vld [vmem:[%s290 + $0x8] sm:$0xf]
        %v299 = vld [vmem:[%s2] sm:$0xff]
        %v300 = vld [vmem:[%s3] sm:$0xff]
        %302 = vset.pattern.permute.xlu0 0
        %303 = vperm.xlu0 %302, %v300
        %v304 = vpop.permute.xlu0 %303
        %v308 = vcombine.high %v297, %v297
        %vm309 = vcmask 31744
        %v311 = vsel %vm309, %v299, 0
        %vm313 = vcmask 1043456
        %v314 = vsel %vm313, %v297, 0
        %v316 = vsel %vm313, %v308, 0
        %v318 = vsel %vm313, %v298, 0
        %320 = vmatprep.subr.mxu0 %v316
        %321 = vmatpush1.msra.mxu0 %v314
        %322 = vmatprep.subr.mxu0 0.0
        %323 = vmatpush1.msra.mxu0 0.0
        %324 = vmatprep.subr.mxu0 0.0
        %325 = vmatpush1.msra.mxu0 0.0
        %326 = vmatprep.subr.mxu0 0.0
        %327 = vmatpush1.msra.mxu0 0.0
        %328 = vmatprep.subr.mxu0 0.0
        %329 = vmatpush1.msra.mxu0 0.0
        %330 = vmatprep.subr.mxu0 0.0
        %331 = vmatpush1.msra.mxu0 0.0
        %332 = vmatprep.subr.mxu0 0.0
        %333 = vmatpush1.msra.mxu0 0.0
        %334 = vmatprep.subr.mxu0 0.0
        %335 = vmatpush1.msra.mxu0 0.0
        %336 = vmatprep.subr.mxu0 0.0
        %337 = vmatpush1.msra.mxu0 0.0
        %338 = vmatprep.subr.mxu0 0.0
        %339 = vmatpush1.msra.mxu0 0.0
        %340 = vmatprep.subr.mxu0 0.0
        %341 = vmatpush1.msra.mxu0 0.0
        %342 = vmatprep.subr.mxu0 0.0
        %343 = vmatpush1.msra.mxu0 0.0
        %344 = vmatprep.subr.mxu0 0.0
        %345 = vmatpush1.msra.mxu0 0.0
        %346 = vmatprep.subr.mxu0 0.0
        %347 = vmatpush1.msra.mxu0 0.0
        %348 = vmatprep.subr.mxu0 0.0
        %349 = vmatpush1.msra.mxu0 0.0
        %350 = vmatprep.subr.mxu0 0.0
        %351 = vmatpush1.msra.mxu0 0.0
        %352 = vmatprep.subr.mxu0 0.0
        %353 = vmatpush1.msra.mxu0 0.0
        %354 = vmatprep.subr.mxu0 0.0
        %355 = vmatpush1.msra.mxu0 0.0
        %356 = vmatprep.subr.mxu0 0.0
        %357 = vmatpush1.msra.mxu0 0.0
        %358 = vmatprep.subr.mxu0 0.0
        %359 = vmatpush1.msra.mxu0 0.0
        %360 = vmatprep.subr.mxu0 0.0
        %361 = vmatpush1.msra.mxu0 0.0
        %362 = vmatprep.subr.mxu0 0.0
        %363 = vmatpush1.msra.mxu0 0.0
        %364 = vmatprep.subr.mxu0 0.0
        %365 = vmatpush1.msra.mxu0 0.0
        %366 = vmatprep.subr.mxu0 0.0
        %367 = vmatpush1.msra.mxu0 0.0
        %368 = vmatprep.subr.mxu0 0.0
        %369 = vmatpush1.msra.mxu0 0.0
        %370 = vmatprep.subr.mxu0 0.0
        %371 = vmatpush1.msra.mxu0 0.0
        %372 = vmatprep.subr.mxu0 0.0
        %373 = vmatpush1.msra.mxu0 0.0
        %374 = vmatprep.subr.mxu0 0.0
        %375 = vmatpush1.msra.mxu0 0.0
        %376 = vmatprep.subr.mxu0 0.0
        %377 = vmatpush1.msra.mxu0 0.0
        %378 = vmatprep.subr.mxu0 0.0
        %379 = vmatpush1.msra.mxu0 0.0
        %380 = vmatprep.subr.mxu0 0.0
        %381 = vmatpush1.msra.mxu0 0.0
        %382 = vmatprep.subr.mxu0 0.0
        %383 = vmatpush1.msra.mxu0 0.0
        %384 = vmatprep.mubr.f32.mxu0 0.0
        %385 = vmatmul.mubr.f32.gmra.mrb[0].mxu0 %v311
        %v386 = vpop.f32.mrb[0].mxu0
        %v387 = vadd.f32 %v304, %v386
        %v388 = vpop.f32.mrb[0].mxu0
        %v389 = vadd.f32 %v304, %v388
        %390 = vdwg.mxu0
        %391 = vmatprep.subr.mxu0 0.0
        %392 = vmatpush1.msra.mxu0 %v318
        %393 = vmatprep.subr.mxu0 0.0
        %394 = vmatpush1.msra.mxu0 0.0
        %395 = vmatprep.subr.mxu0 0.0
        %396 = vmatpush1.msra.mxu0 0.0
        %397 = vmatprep.subr.mxu0 0.0
        %398 = vmatpush1.msra.mxu0 0.0
        %399 = vmatprep.subr.mxu0 0.0
        %400 = vmatpush1.msra.mxu0 0.0
        %401 = vmatprep.subr.mxu0 0.0
        %402 = vmatpush1.msra.mxu0 0.0
        %403 = vmatprep.subr.mxu0 0.0
        %404 = vmatpush1.msra.mxu0 0.0
        %405 = vmatprep.subr.mxu0 0.0
        %406 = vmatpush1.msra.mxu0 0.0
        %407 = vmatprep.subr.mxu0 0.0
        %408 = vmatpush1.msra.mxu0 0.0
        %409 = vmatprep.subr.mxu0 0.0
        %410 = vmatpush1.msra.mxu0 0.0
        %411 = vmatprep.subr.mxu0 0.0
        %412 = vmatpush1.msra.mxu0 0.0
        %413 = vmatprep.subr.mxu0 0.0
        %414 = vmatpush1.msra.mxu0 0.0
        %415 = vmatprep.subr.mxu0 0.0
        %416 = vmatpush1.msra.mxu0 0.0
        %417 = vmatprep.subr.mxu0 0.0
        %418 = vmatpush1.msra.mxu0 0.0
        %419 = vmatprep.subr.mxu0 0.0
        %420 = vmatpush1.msra.mxu0 0.0
        %421 = vmatprep.subr.mxu0 0.0
        %422 = vmatpush1.msra.mxu0 0.0
        %423 = vmatprep.subr.mxu0 0.0
        %424 = vmatpush1.msra.mxu0 0.0
        %425 = vmatprep.subr.mxu0 0.0
        %426 = vmatpush1.msra.mxu0 0.0
        %427 = vmatprep.subr.mxu0 0.0
        %428 = vmatpush1.msra.mxu0 0.0
        %429 = vmatprep.subr.mxu0 0.0
        %430 = vmatpush1.msra.mxu0 0.0
        %431 = vmatprep.subr.mxu0 0.0
        %432 = vmatpush1.msra.mxu0 0.0
        %433 = vmatprep.subr.mxu0 0.0
        %434 = vmatpush1.msra.mxu0 0.0
        %435 = vmatprep.subr.mxu0 0.0
        %436 = vmatpush1.msra.mxu0 0.0
        %437 = vmatprep.subr.mxu0 0.0
        %438 = vmatpush1.msra.mxu0 0.0
        %439 = vmatprep.subr.mxu0 0.0
        %440 = vmatpush1.msra.mxu0 0.0
        %441 = vmatprep.subr.mxu0 0.0
        %442 = vmatpush1.msra.mxu0 0.0
        %443 = vmatprep.subr.mxu0 0.0
        %444 = vmatpush1.msra.mxu0 0.0
        %445 = vmatprep.subr.mxu0 0.0
        %446 = vmatpush1.msra.mxu0 0.0
        %447 = vmatprep.subr.mxu0 0.0
        %448 = vmatpush1.msra.mxu0 0.0
        %449 = vmatprep.subr.mxu0 0.0
        %450 = vmatpush1.msra.mxu0 0.0
        %451 = vmatprep.subr.mxu0 0.0
        %452 = vmatpush1.msra.mxu0 0.0
        %453 = vmatprep.subr.mxu0 0.0
        %454 = vmatpush1.msra.mxu0 0.0
        %455 = vmatprep.mubr.f32.mxu0 0.0
        %456 = vmatmul.mubr.f32.gmra.mrb[0].mxu0 %v311
        %v457 = vpop.f32.mrb[0].mxu0
        %v458 = vadd.f32 %v304, %v457
        %v459 = vpop.f32.mrb[0].mxu0
        %460 = vdwg.mxu0
        %v461 = vsel %vm293, 1, 0
        %v462 = vlaneseq
        %v463 = vshrl.u32 %v462, 7
        %v464 = vsub.s32 0, %v463
        %v465 = vrot.slane %v461, %v464
        %v466 = vlaneseq
        %v467 = vshrl.u32 %v466, 7
        %v468 = vsub.s32 1, %v467
        %v469 = vrot.slane %v461, %v468
        %vm470 = vcmp.eq.s32.totalorder %v465, 1
        %vm471 = vcmp.eq.s32.totalorder %v469, 1
        %v472 = vsel %vm296, 1, 0
        %v473 = vlaneseq
        %v474 = vshrl.u32 %v473, 7
        %v475 = vsub.s32 0, %v474
        %v476 = vrot.slane %v472, %v475
        %v477 = vlaneseq
        %v478 = vshrl.u32 %v477, 7
        %v479 = vsub.s32 1, %v478
        %v480 = vrot.slane %v472, %v479
        %vm481 = vcmp.eq.s32.totalorder %v476, 1
        %vm482 = vcmp.eq.s32.totalorder %v480, 1
        %483 = vrot.lane.b32.xlu0 %v387, 1
        %v484 = vpop.permute.xlu0 %483
        %485 = vrot.lane.b32.xlu0 %v389, 1
        %v486 = vpop.permute.xlu0 %485
        %487 = vrot.lane.b32.xlu0 %v458, 1
        %v488 = vpop.permute.xlu0 %487
        %v489 = vlaneseq
        %v490 = vand.u32 %v489, 127
        %vm491 = vcmp.lt.s32.totalorder %v490, 1
        %v492 = vsel %vm491, %v484, %v486
        %v493 = vsel %vm491, %v488, %v484
        %v494 = vsel %vm470, %v304, %v493
        %v495 = vsel %vm471, %v304, %v492
        %496 = vrot.lane.b32.xlu0 %v387, 127
        %v497 = vpop.permute.xlu0 %496
        %498 = vrot.lane.b32.xlu0 %v389, 127
        %v499 = vpop.permute.xlu0 %498
        %500 = vrot.lane.b32.xlu0 %v458, 127
        %v501 = vpop.permute.xlu0 %500
        %vm502 = vcmp.lt.s32.totalorder %v490, 127
        %v503 = vsel %vm502, %v499, %v501
        %v504 = vsel %vm502, %v497, %v499
        %v505 = vsel %vm481, %v304, %v504
        %v506 = vsel %vm482, %v304, %v503
        %507 = vrot.lane.b32.xlu0 %v387, 113
        %v508 = vpop.permute.xlu0 %507
        %509 = vrot.lane.b32.xlu0 %v389, 113
        %v510 = vpop.permute.xlu0 %509
        %511 = vrot.lane.b32.xlu0 %v458, 113
        %v512 = vpop.permute.xlu0 %511
        %vm513 = vcmp.lt.s32.totalorder %v490, 113
        %v514 = vsel %vm513, %v510, %v512
        %v515 = vsel %vm513, %v508, %v510
        %v516 = vsel %vm470, %v304, %v515
        %v517 = vsel %vm471, %v304, %v514
        %518 = vrot.lane.b32.xlu0 %v387, 112
        %v519 = vpop.permute.xlu0 %518
        %520 = vrot.lane.b32.xlu0 %v389, 112
        %v521 = vpop.permute.xlu0 %520
        %522 = vrot.lane.b32.xlu0 %v458, 112
        %v523 = vpop.permute.xlu0 %522
        %vm524 = vcmp.lt.s32.totalorder %v490, 112
        %v525 = vsel %vm524, %v521, %v523
        %v526 = vsel %vm524, %v519, %v521
        %527 = vrot.lane.b32.xlu0 %v387, 111
        %v528 = vpop.permute.xlu0 %527
        %529 = vrot.lane.b32.xlu0 %v389, 111
        %v530 = vpop.permute.xlu0 %529
        %531 = vrot.lane.b32.xlu0 %v458, 111
        %v532 = vpop.permute.xlu0 %531
        %vm533 = vcmp.lt.s32.totalorder %v490, 111
        %v534 = vsel %vm533, %v530, %v532
        %v535 = vsel %vm533, %v528, %v530
        %v536 = vsel %vm481, %v304, %v535
        %v537 = vsel %vm482, %v304, %v534
        %538 = vrot.lane.b32.xlu0 %v387, 97
        %v539 = vpop.permute.xlu0 %538
        %540 = vrot.lane.b32.xlu0 %v389, 97
        %v541 = vpop.permute.xlu0 %540
        %542 = vrot.lane.b32.xlu0 %v458, 97
        %v543 = vpop.permute.xlu0 %542
        %vm544 = vcmp.lt.s32.totalorder %v490, 97
        %v545 = vsel %vm544, %v541, %v543
        %v546 = vsel %vm544, %v539, %v541
        %v547 = vsel %vm470, %v304, %v546
        %v548 = vsel %vm471, %v304, %v545
        %549 = vrot.lane.b32.xlu0 %v387, 96
        %v550 = vpop.permute.xlu0 %549
        %551 = vrot.lane.b32.xlu0 %v389, 96
        %v552 = vpop.permute.xlu0 %551
        %553 = vrot.lane.b32.xlu0 %v458, 96
        %v554 = vpop.permute.xlu0 %553
        %vm555 = vcmp.lt.s32.totalorder %v490, 96
        %v556 = vsel %vm555, %v552, %v554
        %v557 = vsel %vm555, %v550, %v552
        %558 = vrot.lane.b32.xlu0 %v387, 95
        %v559 = vpop.permute.xlu0 %558
        %560 = vrot.lane.b32.xlu0 %v389, 95
        %v561 = vpop.permute.xlu0 %560
        %562 = vrot.lane.b32.xlu0 %v458, 95
        %v563 = vpop.permute.xlu0 %562
        %vm564 = vcmp.lt.s32.totalorder %v490, 95
        %v565 = vsel %vm564, %v561, %v563
        %v566 = vsel %vm564, %v559, %v561
        %v567 = vsel %vm481, %v304, %v566
        %v568 = vsel %vm482, %v304, %v565
        %v569 = vld [vmem:[%s4] sm:$0xf]
        %v570 = vld [vmem:[%s5] sm:$0xf]
        %572 = vset.pattern.permute.xlu0 0
        %573 = vperm.xlu0 %572, %v570
        %v574 = vpop.permute.xlu0 %573
        %vm576 = vcmask 588800
        %v578 = vsel %vm576, %v569, 0
        %580 = vmatprep.subr.mxu0 %v495
        %581 = vmatpush1.msra.mxu0 %v494
        %582 = vmatprep.subr.mxu0 %v389
        %583 = vmatpush1.msra.mxu0 %v387
        %584 = vmatprep.subr.mxu0 %v506
        %585 = vmatpush1.msra.mxu0 %v505
        %586 = vmatprep.subr.mxu0 %v517
        %587 = vmatpush1.msra.mxu0 %v516
        %588 = vmatprep.subr.mxu0 %v525
        %589 = vmatpush1.msra.mxu0 %v526
        %590 = vmatprep.subr.mxu0 %v537
        %591 = vmatpush1.msra.mxu0 %v536
        %592 = vmatprep.subr.mxu0 %v548
        %593 = vmatpush1.msra.mxu0 %v547
        %594 = vmatprep.subr.mxu0 %v556
        %595 = vmatpush1.msra.mxu0 %v557
        %596 = vmatprep.subr.mxu0 %v568
        %597 = vmatpush1.msra.mxu0 %v567
        %598 = vmatprep.subr.mxu0 0.0
        %599 = vmatpush1.msra.mxu0 0.0
        %600 = vmatprep.subr.mxu0 0.0
        %601 = vmatpush1.msra.mxu0 0.0
        %602 = vmatprep.subr.mxu0 0.0
        %603 = vmatpush1.msra.mxu0 0.0
        %604 = vmatprep.subr.mxu0 0.0
        %605 = vmatpush1.msra.mxu0 0.0
        %606 = vmatprep.subr.mxu0 0.0
        %607 = vmatpush1.msra.mxu0 0.0
        %608 = vmatprep.subr.mxu0 0.0
        %609 = vmatpush1.msra.mxu0 0.0
        %610 = vmatprep.subr.mxu0 0.0
        %611 = vmatpush1.msra.mxu0 0.0
        %612 = vmatprep.subr.mxu0 0.0
        %613 = vmatpush1.msra.mxu0 0.0
        %614 = vmatprep.subr.mxu0 0.0
        %615 = vmatpush1.msra.mxu0 0.0
        %616 = vmatprep.subr.mxu0 0.0
        %617 = vmatpush1.msra.mxu0 0.0
        %618 = vmatprep.subr.mxu0 0.0
        %619 = vmatpush1.msra.mxu0 0.0
        %620 = vmatprep.subr.mxu0 0.0
        %621 = vmatpush1.msra.mxu0 0.0
        %622 = vmatprep.subr.mxu0 0.0
        %623 = vmatpush1.msra.mxu0 0.0
        %624 = vmatprep.subr.mxu0 0.0
        %625 = vmatpush1.msra.mxu0 0.0
        %626 = vmatprep.subr.mxu0 0.0
        %627 = vmatpush1.msra.mxu0 0.0
        %628 = vmatprep.subr.mxu0 0.0
        %629 = vmatpush1.msra.mxu0 0.0
        %630 = vmatprep.subr.mxu0 0.0
        %631 = vmatpush1.msra.mxu0 0.0
        %632 = vmatprep.subr.mxu0 0.0
        %633 = vmatpush1.msra.mxu0 0.0
        %634 = vmatprep.subr.mxu0 0.0
        %635 = vmatpush1.msra.mxu0 0.0
        %636 = vmatprep.subr.mxu0 0.0
        %637 = vmatpush1.msra.mxu0 0.0
        %638 = vmatprep.subr.mxu0 0.0
        %639 = vmatpush1.msra.mxu0 0.0
        %640 = vmatprep.subr.mxu0 0.0
        %641 = vmatpush1.msra.mxu0 0.0
        %642 = vmatprep.subr.mxu0 0.0
        %643 = vmatpush1.msra.mxu0 0.0
        %644 = vmatprep.mubr.f32.mxu0 0.0
        %645 = vmatmul.mubr.f32.gmra.mrb[0].mxu0 %v578
        %v646 = vpop.f32.mrb[0].mxu0
        %v647 = vadd.f32 %v574, %v646
        %v648 = vpop.f32.mrb[0].mxu0
        %v649 = vadd.f32 %v574, %v648
        %650 = vdwg.mxu0
        %v653 = vcombine.low %v647, %v649
        %655 = vst [vmem:[%s281] sm:$0xff] %v653
        %s656 = sand.u32 %s176, 1
        %s657 = scalar_lea.sflag [#allocation4], %s656
        %s658 = sand.u32 %s176, 1
        %s659 = smul.addr %s658, 8
        %s660 = scalar_lea.vmem [#allocation5], %s659
        // Predicated region
        $region49: #{tpu_custom_call.1} parent=43 // pred_check
          %p661 = pneg %p186
        $region50: #{tpu_custom_call.1} parent=43 // pred_check_branch
          %663 = sbr.rel (%p661) target = $region52
        $region51: #{tpu_custom_call.1} parent=43 // pred_region
          %s664 = smul.u32 2, %s26
          %s666 = ssub.s32 128, 128
          %667 = vsyncadd %s657, %s666
          %s668 = smul.addr %s25, 2
          %s669 = sadd.s32 %s664, %s668
          %s670 = smul.addr %s669, 64
          %s671 = scalar_lea.hbm %s6, %s670
          %s673 = sshll.u32 %s660, 4
          %s674 = int_to_ptr.vmem [resolvable:$true] %s673
          %676 = dma.vmem_to_hbm [thread:$0]  %s674, 128, %s671, %s657
        $region52: #{tpu_custom_call.1} parent=43 // pred_fallthru
          _
      $region44: #{tpu_custom_call.1} parent=5 // pred_fallthru
        _
      %p677 = scmp.le.s32.totalorder 2, %s16
      // Predicated region
      $region53: #{tpu_custom_call.1} parent=5 // pred_check
        %p678 = pneg %p677
      $region54: #{tpu_custom_call.1} parent=5 // pred_check_branch
        %680 = sbr.rel (%p678) target = $region56
      $region55: #{tpu_custom_call.1} parent=5 // pred_region
        %s681 = ssub.s32 %s16, 2
        // Predicated region
        $region57: #{tpu_custom_call.1} parent=55 // pred_check
          %p682 = pneg %p192
        $region58: #{tpu_custom_call.1} parent=55 // pred_check_branch
          %684 = sbr.rel (%p682) target = $region60
        $region59: #{tpu_custom_call.1} parent=55 // pred_region
          %s685 = sand.u32 %s177, 1
          %s686 = scalar_lea.sflag [#allocation4], %s685
          %s687 = sand.u32 %s177, 1
          %s688 = smul.addr %s687, 8
          %s689 = scalar_lea.vmem [#allocation5], %s688
          %690 = dma.done %s686, 128
        $region60: #{tpu_custom_call.1} parent=55 // pred_fallthru
          _
      $region56: #{tpu_custom_call.1} parent=5 // pred_fallthru
        _
    $region6: #{tpu_custom_call.1} parent=1 // loop_footer
      %s20 = sadd.s32 1, %s16
    $region7: #{tpu_custom_call.1} parent=1 // loop_footer_branch
      %15 = sbr.rel target = $region3
    $region8: #{tpu_custom_call.1} parent=1 // loop_exit
      _
    %691 = vsyncpa [#allocation3], 1
    %s692 = scalar_lea.sflag [#allocation3], 1
    %693 = vsyncpa %s692, 1
    %694 = vsyncpa [#allocation4], 1
    %s695 = scalar_lea.sflag [#allocation4], 1
    %696 = vsyncpa %s695, 1

</llo_original>
